<compile_context>
chip_gen: v7x
topology: tpu7x:2x2x1
jax: 0.10.0
libtpu: 0.0.40
codegen_flags: <defaults>
</compile_context>

<pallas_src>
import math
import jax
import jax.numpy as jnp
from jax.experimental import pallas as pl
from jax.experimental.pallas import tpu as pltpu

INPUT_SIZE = 3
OUTPUT_SIZE = 4
HIDDEN_SIZE = 256
NEG_SLOPE = 0.1
MAX_TILE_B = 2048        # batch tile cap (multiple of 8); amortizes per-step overhead
MIN_GRID_STEPS = 2       # >=2 grid steps so both v7x TensorCores get work


def _leaky_relu(v, slope=NEG_SLOPE):
    return jnp.where(v > 0, v, slope * v)


def _round_up(n, m):
    return ((n + m - 1) // m) * m


def _cdiv(a, b):
    return (a + b - 1) // b


def _mlp_kernel(x_ref, h_ref, w1x_ref, w1h_ref, b1_ref,
                w2_ref, b2_ref, w3_ref, b3_ref, o_ref):
    """One batch tile of the 3-layer MLP.

    Layer 1 is algebraically split: leaky(x @ W1_x + (h @ W1_h + b1)).
    The h-part is a tiny in-kernel (1,256)x(256,256) f32 dot (noise per step);
    the K=3 x-contraction is done as three VPU broadcast-FMAs (VALU filler).
    Layer 2 is the dominant matmul and runs in bf16 with f32 accumulation.
    """
    x = x_ref[...]                                        # (TILE_B, 3) f32
    w1x = w1x_ref[...]                                    # (3, 256)   f32

    # h contribution + bias, broadcast over the batch tile.
    hc = jnp.dot(h_ref[...], w1h_ref[...],
                 preferred_element_type=jnp.float32) + b1_ref[...]   # (1, 256)

    h1 = hc
    for i in range(INPUT_SIZE):                           # 3 VPU FMAs
        h1 = h1 + x[:, i:i + 1] * w1x[i:i + 1, :]
    h1 = _leaky_relu(h1)                                  # (TILE_B, 256) f32

    # Layer 2: bf16 MXU matmul (dominant cost), f32 accumulate, f32 epilogue.
    h2 = jnp.dot(h1.astype(jnp.bfloat16), w2_ref[...],
                 preferred_element_type=jnp.float32) + b2_ref[...]
    h2 = _leaky_relu(h2)                                  # (TILE_B, 256) f32

    # Layer 3: tiny (K=256, N=4) kept in f32 for numerics.
    h3 = jnp.dot(h2, w3_ref[...],
                 preferred_element_type=jnp.float32) + b3_ref[...]
    o_ref[...] = _leaky_relu(h3).astype(o_ref.dtype)      # (TILE_B, 4)


def init_params(key):
    """Deterministic PyTorch-Linear-style init (uniform +/- 1/sqrt(fan_in))."""
    ks = jax.random.split(key, 6)

    def linear(kw, kb, fan_in, fan_out):
        bound = 1.0 / math.sqrt(fan_in)
        w = jax.random.uniform(kw, (fan_in, fan_out), jnp.float32, -bound, bound)
        b = jax.random.uniform(kb, (1, fan_out), jnp.float32, -bound, bound)
        return w, b

    w1, b1 = linear(ks[0], ks[1], HIDDEN_SIZE + INPUT_SIZE, HIDDEN_SIZE)
    w2, b2 = linear(ks[2], ks[3], HIDDEN_SIZE, HIDDEN_SIZE)
    w3, b3 = linear(ks[4], ks[5], HIDDEN_SIZE, OUTPUT_SIZE)
    return dict(w1=w1, b1=b1, w2=w2, b2=b2, w3=w3, b3=b3)


def prepare_params(params):
    """One-time param prep: split W1 into x/h parts, cast W2 to bf16."""
    w1 = params["w1"]
    return dict(
        w1x=w1[:INPUT_SIZE, :],                         # (3, 256)   f32 (VPU path)
        w1h=w1[INPUT_SIZE:, :],                         # (256, 256) f32 (tiny dot)
        b1=params["b1"],                                # (1, 256)   f32
        w2=params["w2"].astype(jnp.bfloat16),           # (256, 256) bf16 (MXU)
        b2=params["b2"],                                # (1, 256)   f32
        w3=params["w3"],                                # (256, 4)   f32
        b3=params["b3"],                                # (1, 4)     f32
    )


def arclen_decoder_forward(x, h, prep):
    """x: (B, input_size) f32, h: (1, hidden_size) f32 -> (B, output_size) f32."""
    B = x.shape[0]

    # Batch tiling: aim for >=MIN_GRID_STEPS grid steps (v7x dual-TC sharding),
    # tile multiple of 8 sublanes, capped so per-step VMEM is B-independent.
    n_tiles = max(MIN_GRID_STEPS, _cdiv(B, MAX_TILE_B))
    tile_b = max(8, min(MAX_TILE_B, _round_up(_cdiv(B, n_tiles), 8)))
    b_pad = _round_up(B, tile_b)
    x_p = jnp.pad(x, ((0, b_pad - B), (0, 0))) if b_pad != B else x
    grid = (b_pad // tile_b,)

    const = lambda i: (0, 0)   # weights/biases: VMEM-resident, never re-DMA'd

    flops = 2 * b_pad * (INPUT_SIZE * HIDDEN_SIZE
                         + HIDDEN_SIZE * HIDDEN_SIZE
                         + HIDDEN_SIZE * OUTPUT_SIZE)
    bytes_accessed = (4 * b_pad * (INPUT_SIZE + OUTPUT_SIZE)
                      + 4 * HIDDEN_SIZE * (INPUT_SIZE + HIDDEN_SIZE + OUTPUT_SIZE + 3)
                      + 2 * HIDDEN_SIZE * HIDDEN_SIZE      # bf16 W2
                      + 4 * (HIDDEN_SIZE + OUTPUT_SIZE))

    out = pl.pallas_call(
        _mlp_kernel,
        out_shape=jax.ShapeDtypeStruct((b_pad, OUTPUT_SIZE), jnp.float32),
        grid_spec=pltpu.PrefetchScalarGridSpec(
            num_scalar_prefetch=0,
            grid=grid,
            in_specs=[
                pl.BlockSpec((tile_b, INPUT_SIZE), lambda i: (i, 0)),     # x tile
                pl.BlockSpec((1, HIDDEN_SIZE), const),                    # h
                pl.BlockSpec((INPUT_SIZE, HIDDEN_SIZE), const),           # W1_x
                pl.BlockSpec((HIDDEN_SIZE, HIDDEN_SIZE), const),          # W1_h
                pl.BlockSpec((1, HIDDEN_SIZE), const),                    # b1
                pl.BlockSpec((HIDDEN_SIZE, HIDDEN_SIZE), const),          # W2 (bf16)
                pl.BlockSpec((1, HIDDEN_SIZE), const),                    # b2
                pl.BlockSpec((HIDDEN_SIZE, OUTPUT_SIZE), const),          # W3
                pl.BlockSpec((1, OUTPUT_SIZE), const),                    # b3
            ],
            out_specs=pl.BlockSpec((tile_b, OUTPUT_SIZE), lambda i: (i, 0)),
        ),
        compiler_params=pltpu.CompilerParams(
            dimension_semantics=("parallel",),
            vmem_limit_bytes=48 * 1024 * 1024),
        cost_estimate=pl.CostEstimate(flops=flops, transcendentals=0,
                                      bytes_accessed=bytes_accessed),
    )(x_p, h, prep["w1x"], prep["w1h"], prep["b1"],
      prep["w2"], prep["b2"], prep["w3"], prep["b3"])

    return out[:B]


def _reference(x, h, params):
    B = x.shape[0]
    hb = jnp.broadcast_to(h.reshape(1, HIDDEN_SIZE), (B, HIDDEN_SIZE))
    y = jnp.concatenate([x, hb], axis=1)
    hi = jax.lax.Precision.HIGHEST
    h1 = _leaky_relu(jnp.dot(y, params["w1"], precision=hi) + params["b1"])
    h2 = _leaky_relu(jnp.dot(h1, params["w2"], precision=hi) + params["b2"])
    return _leaky_relu(jnp.dot(h2, params["w3"], precision=hi) + params["b3"])


if __name__ == "__main__":
    key = jax.random.PRNGKey(0)
    k_params, k_x, k_h = jax.random.split(key, 3)

    params = init_params(k_params)
    prep = prepare_params(params)
    h = jax.random.normal(k_h, (1, HIDDEN_SIZE), jnp.float32)

    # B=8: single grid step; B=300: exercises padding + 2-step parallel grid.
    for B in (8, 300):
        x = jax.random.normal(jax.random.fold_in(k_x, B), (B, INPUT_SIZE), jnp.float32)
        out = jax.block_until_ready(arclen_decoder_forward(x, h, prep))
        ref = jax.block_until_ready(_reference(x, h, params))
        assert out.shape == (B, OUTPUT_SIZE)
        # Tolerance relaxed vs. the all-f32 version: layer-2 matmul runs in bf16.
        assert jnp.allclose(out, ref, atol=1e-2, rtol=1e-2), \
            float(jnp.max(jnp.abs(out - ref)))

    print("KERNEL_OK")
</pallas_src>

<mosaic_0001>
module attributes {stable_mosaic.version = 11 : i64} {
  func.func @_mlp_kernel(%arg0: i32, %arg1: memref<8x3xf32, #tpu.memory_space<vmem>>, %arg2: memref<1x256xf32, #tpu.memory_space<vmem>>, %arg3: memref<3x256xf32, #tpu.memory_space<vmem>>, %arg4: memref<256x256xf32, #tpu.memory_space<vmem>>, %arg5: memref<1x256xf32, #tpu.memory_space<vmem>>, %arg6: memref<256x256xbf16, #tpu.memory_space<vmem>>, %arg7: memref<1x256xf32, #tpu.memory_space<vmem>>, %arg8: memref<256x4xf32, #tpu.memory_space<vmem>>, %arg9: memref<1x4xf32, #tpu.memory_space<vmem>>, %arg10: memref<8x4xf32, #tpu.memory_space<vmem>>) attributes {dimension_semantics = [#tpu.dimension_semantics<parallel>], iteration_bounds = array<i64: 1>, scalar_prefetch = 0 : i64, scratch_operands = 0 : i64, tpu.core_type = #tpu.core_type<tc>, window_params = [{transform_indices = @transform_0, window_bounds = array<i64: 8, 3>}, {pipeline_mode = #tpu.pipeline_mode<synchronous>, transform_indices = @transform_1, window_bounds = array<i64: 1, 256>}, {pipeline_mode = #tpu.pipeline_mode<synchronous>, transform_indices = @transform_2, window_bounds = array<i64: 3, 256>}, {pipeline_mode = #tpu.pipeline_mode<synchronous>, transform_indices = @transform_3, window_bounds = array<i64: 256, 256>}, {pipeline_mode = #tpu.pipeline_mode<synchronous>, transform_indices = @transform_4, window_bounds = array<i64: 1, 256>}, {pipeline_mode = #tpu.pipeline_mode<synchronous>, transform_indices = @transform_5, window_bounds = array<i64: 256, 256>}, {pipeline_mode = #tpu.pipeline_mode<synchronous>, transform_indices = @transform_6, window_bounds = array<i64: 1, 256>}, {pipeline_mode = #tpu.pipeline_mode<synchronous>, transform_indices = @transform_7, window_bounds = array<i64: 256, 4>}, {pipeline_mode = #tpu.pipeline_mode<synchronous>, transform_indices = @transform_8, window_bounds = array<i64: 1, 4>}, {transform_indices = @transform_9, window_bounds = array<i64: 8, 4>}]} {
    %c0 = arith.constant 0 : index
    %c0_0 = arith.constant 0 : index
    %0 = vector.load %arg1[%c0, %c0_0] : memref<8x3xf32, #tpu.memory_space<vmem>>, vector<8x3xf32>
    %c0_1 = arith.constant 0 : index
    %c0_2 = arith.constant 0 : index
    %1 = vector.load %arg3[%c0_1, %c0_2] : memref<3x256xf32, #tpu.memory_space<vmem>>, vector<3x256xf32>
    %c0_3 = arith.constant 0 : index
    %c0_4 = arith.constant 0 : index
    %2 = vector.load %arg2[%c0_3, %c0_4] : memref<1x256xf32, #tpu.memory_space<vmem>>, vector<1x256xf32>
    %c0_5 = arith.constant 0 : index
    %c0_6 = arith.constant 0 : index
    %3 = vector.load %arg4[%c0_5, %c0_6] : memref<256x256xf32, #tpu.memory_space<vmem>>, vector<256x256xf32>
    %cst = arith.constant dense<0.000000e+00> : vector<1x256xf32>
    %4 = tpu.matmul %2, %3, %cst {dimension_numbers = #tpu.dot_dimension_numbers<[1], [0], [0], [1], [0, 0, 1, 1], [], []>} : vector<1x256xf32>, vector<256x256xf32>, vector<1x256xf32> -> vector<1x256xf32>
    %c0_7 = arith.constant 0 : index
    %c0_8 = arith.constant 0 : index
    %5 = vector.load %arg5[%c0_7, %c0_8] : memref<1x256xf32, #tpu.memory_space<vmem>>, vector<1x256xf32>
    %6 = arith.addf %4, %5 : vector<1x256xf32>
    %7 = vector.extract_strided_slice %0 {offsets = [0, 0], sizes = [8, 1], strides = [1, 1]} : vector<8x3xf32> to vector<8x1xf32>
    %8 = vector.extract_strided_slice %1 {offsets = [0, 0], sizes = [1, 256], strides = [1, 1]} : vector<3x256xf32> to vector<1x256xf32>
    %9 = vector.broadcast %7 : vector<8x1xf32> to vector<8x256xf32>
    %10 = vector.broadcast %8 : vector<1x256xf32> to vector<8x256xf32>
    %11 = arith.mulf %9, %10 : vector<8x256xf32>
    %12 = vector.broadcast %6 : vector<1x256xf32> to vector<8x256xf32>
    %13 = arith.addf %12, %11 : vector<8x256xf32>
    %14 = vector.extract_strided_slice %0 {offsets = [0, 1], sizes = [8, 1], strides = [1, 1]} : vector<8x3xf32> to vector<8x1xf32>
    %15 = vector.extract_strided_slice %1 {offsets = [1, 0], sizes = [1, 256], strides = [1, 1]} : vector<3x256xf32> to vector<1x256xf32>
    %16 = vector.broadcast %14 : vector<8x1xf32> to vector<8x256xf32>
    %17 = vector.broadcast %15 : vector<1x256xf32> to vector<8x256xf32>
    %18 = arith.mulf %16, %17 : vector<8x256xf32>
    %19 = arith.addf %13, %18 : vector<8x256xf32>
    %20 = vector.extract_strided_slice %0 {offsets = [0, 2], sizes = [8, 1], strides = [1, 1]} : vector<8x3xf32> to vector<8x1xf32>
    %21 = vector.extract_strided_slice %1 {offsets = [2, 0], sizes = [1, 256], strides = [1, 1]} : vector<3x256xf32> to vector<1x256xf32>
    %22 = vector.broadcast %20 : vector<8x1xf32> to vector<8x256xf32>
    %23 = vector.broadcast %21 : vector<1x256xf32> to vector<8x256xf32>
    %24 = arith.mulf %22, %23 : vector<8x256xf32>
    %25 = arith.addf %19, %24 : vector<8x256xf32>
    %cst_9 = arith.constant 0.000000e+00 : f32
    %26 = vector.broadcast %cst_9 : f32 to vector<8x256xf32>
    %27 = arith.cmpf ogt, %25, %26 : vector<8x256xf32>
    %cst_10 = arith.constant 1.000000e-01 : f32
    %28 = vector.broadcast %cst_10 : f32 to vector<8x256xf32>
    %29 = arith.mulf %28, %25 : vector<8x256xf32>
    %30 = arith.select %27, %25, %29 : vector<8x256xi1>, vector<8x256xf32>
    %31 = arith.truncf %30 : vector<8x256xf32> to vector<8x256xbf16>
    %c0_11 = arith.constant 0 : index
    %c0_12 = arith.constant 0 : index
    %32 = vector.load %arg6[%c0_11, %c0_12] : memref<256x256xbf16, #tpu.memory_space<vmem>>, vector<256x256xbf16>
    %cst_13 = arith.constant dense<0.000000e+00> : vector<8x256xf32>
    %33 = tpu.matmul %31, %32, %cst_13 {dimension_numbers = #tpu.dot_dimension_numbers<[1], [0], [0], [1], [0, 0, 1, 1], [], []>} : vector<8x256xbf16>, vector<256x256xbf16>, vector<8x256xf32> -> vector<8x256xf32>
    %c0_14 = arith.constant 0 : index
    %c0_15 = arith.constant 0 : index
    %34 = vector.load %arg7[%c0_14, %c0_15] : memref<1x256xf32, #tpu.memory_space<vmem>>, vector<1x256xf32>
    %35 = vector.broadcast %34 : vector<1x256xf32> to vector<8x256xf32>
    %36 = arith.addf %33, %35 : vector<8x256xf32>
    %cst_16 = arith.constant 0.000000e+00 : f32
    %37 = vector.broadcast %cst_16 : f32 to vector<8x256xf32>
    %38 = arith.cmpf ogt, %36, %37 : vector<8x256xf32>
    %cst_17 = arith.constant 1.000000e-01 : f32
    %39 = vector.broadcast %cst_17 : f32 to vector<8x256xf32>
    %40 = arith.mulf %39, %36 : vector<8x256xf32>
    %41 = arith.select %38, %36, %40 : vector<8x256xi1>, vector<8x256xf32>
    %c0_18 = arith.constant 0 : index
    %c0_19 = arith.constant 0 : index
    %42 = vector.load %arg8[%c0_18, %c0_19] : memref<256x4xf32, #tpu.memory_space<vmem>>, vector<256x4xf32>
    %cst_20 = arith.constant dense<0.000000e+00> : vector<8x4xf32>
    %43 = tpu.matmul %41, %42, %cst_20 {dimension_numbers = #tpu.dot_dimension_numbers<[1], [0], [0], [1], [0, 0, 1, 1], [], []>} : vector<8x256xf32>, vector<256x4xf32>, vector<8x4xf32> -> vector<8x4xf32>
    %c0_21 = arith.constant 0 : index
    %c0_22 = arith.constant 0 : index
    %44 = vector.load %arg9[%c0_21, %c0_22] : memref<1x4xf32, #tpu.memory_space<vmem>>, vector<1x4xf32>
    %45 = vector.broadcast %44 : vector<1x4xf32> to vector<8x4xf32>
    %46 = arith.addf %43, %45 : vector<8x4xf32>
    %cst_23 = arith.constant 0.000000e+00 : f32
    %47 = vector.broadcast %cst_23 : f32 to vector<8x4xf32>
    %48 = arith.cmpf ogt, %46, %47 : vector<8x4xf32>
    %cst_24 = arith.constant 1.000000e-01 : f32
    %49 = vector.broadcast %cst_24 : f32 to vector<8x4xf32>
    %50 = arith.mulf %49, %46 : vector<8x4xf32>
    %51 = arith.select %48, %46, %50 : vector<8x4xi1>, vector<8x4xf32>
    %c0_25 = arith.constant 0 : index
    %c0_26 = arith.constant 0 : index
    %52 = vector.load %arg10[%c0_25, %c0_26] : memref<8x4xf32, #tpu.memory_space<vmem>>, vector<8x4xf32>
    tpu.vector_store %arg10[%c0_25, %c0_26], %51 {strides = array<i32>} : memref<8x4xf32, #tpu.memory_space<vmem>>, vector<8x4xf32>,
    return
  }
  func.func @transform_0(%arg0: i32) -> (i32, i32) {
    %c0_i32 = arith.constant 0 : i32
    %c0_i32_0 = arith.constant 0 : i32
    return %arg0, %c0_i32 : i32, i32
  }
  func.func @transform_1(%arg0: i32) -> (i32, i32) {
    %c0_i32 = arith.constant 0 : i32
    %c0_i32_0 = arith.constant 0 : i32
    %c0_i32_1 = arith.constant 0 : i32
    return %c0_i32, %c0_i32_0 : i32, i32
  }
  func.func @transform_2(%arg0: i32) -> (i32, i32) {
    %c0_i32 = arith.constant 0 : i32
    %c0_i32_0 = arith.constant 0 : i32
    %c0_i32_1 = arith.constant 0 : i32
    return %c0_i32, %c0_i32_0 : i32, i32
  }
  func.func @transform_3(%arg0: i32) -> (i32, i32) {
    %c0_i32 = arith.constant 0 : i32
    %c0_i32_0 = arith.constant 0 : i32
    %c0_i32_1 = arith.constant 0 : i32
    return %c0_i32, %c0_i32_0 : i32, i32
  }
  func.func @transform_4(%arg0: i32) -> (i32, i32) {
    %c0_i32 = arith.constant 0 : i32
    %c0_i32_0 = arith.constant 0 : i32
    %c0_i32_1 = arith.constant 0 : i32
    return %c0_i32, %c0_i32_0 : i32, i32
  }
  func.func @transform_5(%arg0: i32) -> (i32, i32) {
    %c0_i32 = arith.constant 0 : i32
    %c0_i32_0 = arith.constant 0 : i32
    %c0_i32_1 = arith.constant 0 : i32
    return %c0_i32, %c0_i32_0 : i32, i32
  }
  func.func @transform_6(%arg0: i32) -> (i32, i32) {
    %c0_i32 = arith.constant 0 : i32
    %c0_i32_0 = arith.constant 0 : i32
    %c0_i32_1 = arith.constant 0 : i32
    return %c0_i32, %c0_i32_0 : i32, i32
  }
  func.func @transform_7(%arg0: i32) -> (i32, i32) {
    %c0_i32 = arith.constant 0 : i32
    %c0_i32_0 = arith.constant 0 : i32
    %c0_i32_1 = arith.constant 0 : i32
    return %c0_i32, %c0_i32_0 : i32, i32
  }
  func.func @transform_8(%arg0: i32) -> (i32, i32) {
    %c0_i32 = arith.constant 0 : i32
    %c0_i32_0 = arith.constant 0 : i32
    %c0_i32_1 = arith.constant 0 : i32
    return %c0_i32, %c0_i32_0 : i32, i32
  }
  func.func @transform_9(%arg0: i32) -> (i32, i32) {
    %c0_i32 = arith.constant 0 : i32
    %c0_i32_0 = arith.constant 0 : i32
    return %arg0, %c0_i32 : i32, i32
  }
}

</mosaic_0001>

<llo_original>
// kernel: tpu_custom_call.1
$region0: #{tpu_custom_call.1}
  #allocation0 [shape = 'u32[]', space=smem, size = 0x4, offset = 0x4, fixed_abs, tag = 'smem constant byte address 0x4 - core index']
  #allocation1 [shape = 'u32[144,128]{1,0:T(1,128)}', space=vmem, size = 0x12000, scoped, tag = 'internal scratch']
  %s0 = inlined_call_operand.vmem [shape: f32[8,3], index: 0, kind: input, shape index: {}]
  %s1 = inlined_call_operand.vmem [shape: f32[1,256], index: 1, kind: input, shape index: {}]
  %s2 = inlined_call_operand.vmem [shape: f32[3,256], index: 2, kind: input, shape index: {}]
  %s3 = inlined_call_operand.hbm [shape: f32[256,256], index: 3, kind: input, shape index: {}]
  %s4 = inlined_call_operand.vmem [shape: f32[1,256], index: 4, kind: input, shape index: {}]
  %s5 = inlined_call_operand.vmem [shape: bf16[256,256], index: 5, kind: input, shape index: {}]
  %s6 = inlined_call_operand.vmem [shape: f32[1,256], index: 6, kind: input, shape index: {}]
  %s7 = inlined_call_operand.vmem [shape: f32[256,4], index: 7, kind: input, shape index: {}]
  %s8 = inlined_call_operand.vmem [shape: f32[1,4], index: 8, kind: input, shape index: {}]
  %s9 = inlined_call_operand.vmem [shape: f32[8,4], index: 9, kind: output, shape index: {}]
  %s10 = sld [smem:[#allocation0]]
  $region50: #{tpu_custom_call.1} parent=0
    _
  %s12 = ssub.s32 1, %s10
  %s13 = scalar_select 0, %s12, %s10
  $region1: #{tpu_custom_call.1} parent=0
    #allocation2 [shape = 'u8[262144]{0}', space=vmem, size = 0x40000, scoped, tag = 'input window, operand 3, single buffered']
    #allocation3 [shape = 's32[1]{0}', space=sflag, size = 0x4, scoped, tag = 'scoped memory for tpu_custom_call.1']
    %14 = vsyncpa [#allocation3], 0
    // Predicated region
    $region2: #{tpu_custom_call.1} parent=1 // pred_check
      _
    $region3: #{tpu_custom_call.1} parent=1 // pred_check_branch
      %16 = sbr.rel (0) target = $region5
    $region4: #{tpu_custom_call.1} parent=1 // pred_region
      _
    $region5: #{tpu_custom_call.1} parent=1 // pred_fallthru
      _
    // Predicated region
    $region6: #{tpu_custom_call.1} parent=1 // pred_check
      _
    $region7: #{tpu_custom_call.1} parent=1 // pred_check_branch
      %18 = sbr.rel (0) target = $region9
    $region8: #{tpu_custom_call.1} parent=1 // pred_region
      _
    $region9: #{tpu_custom_call.1} parent=1 // pred_fallthru
      _
    // Predicated region
    $region10: #{tpu_custom_call.1} parent=1 // pred_check
      _
    $region11: #{tpu_custom_call.1} parent=1 // pred_check_branch
      %20 = sbr.rel (0) target = $region13
    $region12: #{tpu_custom_call.1} parent=1 // pred_region
      _
    $region13: #{tpu_custom_call.1} parent=1 // pred_fallthru
      _
    // Predicated region
    $region14: #{tpu_custom_call.1} parent=1 // pred_check
      _
    $region15: #{tpu_custom_call.1} parent=1 // pred_check_branch
      %22 = sbr.rel (0) target = $region17
    $region16: #{tpu_custom_call.1} parent=1 // pred_region
      %s24 = ssub.s32 8192, 8192
      %25 = vsyncadd [#allocation3], %s24
      %s26 = sshll.u32 [#allocation2], 4
      %s27 = int_to_ptr.vmem [resolvable:$true] %s26
      %32 = dma.hbm_to_vmem [thread:$0]  %s3, 8192, %s27, [#allocation3], 256, 256, 16
    $region17: #{tpu_custom_call.1} parent=1 // pred_fallthru
      _
    // Predicated region
    $region18: #{tpu_custom_call.1} parent=1 // pred_check
      _
    $region19: #{tpu_custom_call.1} parent=1 // pred_check_branch
      %34 = sbr.rel (0) target = $region21
    $region20: #{tpu_custom_call.1} parent=1 // pred_region
      _
    $region21: #{tpu_custom_call.1} parent=1 // pred_fallthru
      _
    // Predicated region
    $region22: #{tpu_custom_call.1} parent=1 // pred_check
      _
    $region23: #{tpu_custom_call.1} parent=1 // pred_check_branch
      %36 = sbr.rel (0) target = $region25
    $region24: #{tpu_custom_call.1} parent=1 // pred_region
      _
    $region25: #{tpu_custom_call.1} parent=1 // pred_fallthru
      _
    // Predicated region
    $region26: #{tpu_custom_call.1} parent=1 // pred_check
      _
    $region27: #{tpu_custom_call.1} parent=1 // pred_check_branch
      %38 = sbr.rel (0) target = $region29
    $region28: #{tpu_custom_call.1} parent=1 // pred_region
      _
    $region29: #{tpu_custom_call.1} parent=1 // pred_fallthru
      _
    // Predicated region
    $region30: #{tpu_custom_call.1} parent=1 // pred_check
      _
    $region31: #{tpu_custom_call.1} parent=1 // pred_check_branch
      %40 = sbr.rel (0) target = $region33
    $region32: #{tpu_custom_call.1} parent=1 // pred_region
      _
    $region33: #{tpu_custom_call.1} parent=1 // pred_fallthru
      _
    // Predicated region
    $region34: #{tpu_custom_call.1} parent=1 // pred_check
      _
    $region35: #{tpu_custom_call.1} parent=1 // pred_check_branch
      %42 = sbr.rel (0) target = $region37
    $region36: #{tpu_custom_call.1} parent=1 // pred_region
      _
    $region37: #{tpu_custom_call.1} parent=1 // pred_fallthru
      _
    // Predicated region
    $region38: #{tpu_custom_call.1} parent=1 // pred_check
      _
    $region39: #{tpu_custom_call.1} parent=1 // pred_check_branch
      %44 = sbr.rel (0) target = $region41
    $region40: #{tpu_custom_call.1} parent=1 // pred_region
      %45 = dma.done [#allocation3], 8192
    $region41: #{tpu_custom_call.1} parent=1 // pred_fallthru
      _
    %v46 = vld [vmem:[%s0] sm:$0xff]
    %v47 = vld [vmem:[%s2] sm:$0x77]
    %v48 = vld [vmem:[%s1] sm:$0x3]
    %v49 = vld [vmem:[#allocation2] sm:$0xff]
    %v50 = vld [vmem:[#allocation2 + $0x8] sm:$0xff]
    %v51 = vld [vmem:[#allocation2 + $0x10] sm:$0xff]
    %v52 = vld [vmem:[#allocation2 + $0x18] sm:$0xff]
    %v53 = vld [vmem:[#allocation2 + $0x20] sm:$0xff]
    %v54 = vld [vmem:[#allocation2 + $0x28] sm:$0xff]
    %v55 = vld [vmem:[#allocation2 + $0x30] sm:$0xff]
    %v56 = vld [vmem:[#allocation2 + $0x38] sm:$0xff]
    %v57 = vld [vmem:[#allocation2 + $0x40] sm:$0xff]
    %v58 = vld [vmem:[#allocation2 + $0x48] sm:$0xff]
    %v59 = vld [vmem:[#allocation2 + $0x50] sm:$0xff]
    %v60 = vld [vmem:[#allocation2 + $0x58] sm:$0xff]
    %v61 = vld [vmem:[#allocation2 + $0x60] sm:$0xff]
    %v62 = vld [vmem:[#allocation2 + $0x68] sm:$0xff]
    %v63 = vld [vmem:[#allocation2 + $0x70] sm:$0xff]
    %v64 = vld [vmem:[#allocation2 + $0x78] sm:$0xff]
    %v65 = vld [vmem:[#allocation2 + $0x80] sm:$0xff]
    %v66 = vld [vmem:[#allocation2 + $0x88] sm:$0xff]
    %v67 = vld [vmem:[#allocation2 + $0x90] sm:$0xff]
    %v68 = vld [vmem:[#allocation2 + $0x98] sm:$0xff]
    %v69 = vld [vmem:[#allocation2 + $0xa0] sm:$0xff]
    %v70 = vld [vmem:[#allocation2 + $0xa8] sm:$0xff]
    %v71 = vld [vmem:[#allocation2 + $0xb0] sm:$0xff]
    %v72 = vld [vmem:[#allocation2 + $0xb8] sm:$0xff]
    %v73 = vld [vmem:[#allocation2 + $0xc0] sm:$0xff]
    %v74 = vld [vmem:[#allocation2 + $0xc8] sm:$0xff]
    %v75 = vld [vmem:[#allocation2 + $0xd0] sm:$0xff]
    %v76 = vld [vmem:[#allocation2 + $0xd8] sm:$0xff]
    %v77 = vld [vmem:[#allocation2 + $0xe0] sm:$0xff]
    %v78 = vld [vmem:[#allocation2 + $0xe8] sm:$0xff]
    %v79 = vld [vmem:[#allocation2 + $0xf0] sm:$0xff]
    %v80 = vld [vmem:[#allocation2 + $0xf8] sm:$0xff]
    %v81 = vld [vmem:[#allocation2 + $0x100] sm:$0xff]
    %v82 = vld [vmem:[#allocation2 + $0x108] sm:$0xff]
    %v83 = vld [vmem:[#allocation2 + $0x110] sm:$0xff]
    %v84 = vld [vmem:[#allocation2 + $0x118] sm:$0xff]
    %v85 = vld [vmem:[#allocation2 + $0x120] sm:$0xff]
    %v86 = vld [vmem:[#allocation2 + $0x128] sm:$0xff]
    %v87 = vld [vmem:[#allocation2 + $0x130] sm:$0xff]
    %v88 = vld [vmem:[#allocation2 + $0x138] sm:$0xff]
    %v89 = vld [vmem:[#allocation2 + $0x140] sm:$0xff]
    %v90 = vld [vmem:[#allocation2 + $0x148] sm:$0xff]
    %v91 = vld [vmem:[#allocation2 + $0x150] sm:$0xff]
    %v92 = vld [vmem:[#allocation2 + $0x158] sm:$0xff]
    %v93 = vld [vmem:[#allocation2 + $0x160] sm:$0xff]
    %v94 = vld [vmem:[#allocation2 + $0x168] sm:$0xff]
    %v95 = vld [vmem:[#allocation2 + $0x170] sm:$0xff]
    %v96 = vld [vmem:[#allocation2 + $0x178] sm:$0xff]
    %v97 = vld [vmem:[#allocation2 + $0x180] sm:$0xff]
    %v98 = vld [vmem:[#allocation2 + $0x188] sm:$0xff]
    %v99 = vld [vmem:[#allocation2 + $0x190] sm:$0xff]
    %v100 = vld [vmem:[#allocation2 + $0x198] sm:$0xff]
    %v101 = vld [vmem:[#allocation2 + $0x1a0] sm:$0xff]
    %v102 = vld [vmem:[#allocation2 + $0x1a8] sm:$0xff]
    %v103 = vld [vmem:[#allocation2 + $0x1b0] sm:$0xff]
    %v104 = vld [vmem:[#allocation2 + $0x1b8] sm:$0xff]
    %v105 = vld [vmem:[#allocation2 + $0x1c0] sm:$0xff]
    %v106 = vld [vmem:[#allocation2 + $0x1c8] sm:$0xff]
    %v107 = vld [vmem:[#allocation2 + $0x1d0] sm:$0xff]
    %v108 = vld [vmem:[#allocation2 + $0x1d8] sm:$0xff]
    %v109 = vld [vmem:[#allocation2 + $0x1e0] sm:$0xff]
    %v110 = vld [vmem:[#allocation2 + $0x1e8] sm:$0xff]
    %v111 = vld [vmem:[#allocation2 + $0x1f0] sm:$0xff]
    %v112 = vld [vmem:[#allocation2 + $0x1f8] sm:$0xff]
    %v113 = vld [vmem:[%s4] sm:$0x3]
    %v115 = vlaneseq
    %v116 = vshrl.u32 %v115, 7
    %v117 = vsub.s32 0, %v116
    %v118 = vrot.slane %v48, %v117
    %v119 = vlaneseq
    %v120 = vshrl.u32 %v119, 7
    %v121 = vsub.s32 1, %v120
    %v122 = vrot.slane %v48, %v121
    %v126 = vlaneseq
    %v127 = vshrl.u32 %v126, 7
    %v128 = vsub.s32 0, %v127
    %v129 = vrot.slane %v113, %v128
    %v130 = vlaneseq
    %v131 = vshrl.u32 %v130, 7
    %v132 = vsub.s32 1, %v131
    %v133 = vrot.slane %v113, %v132
    %136 = vmatprep.subr.mxu0 %v50
    %137 = vmatpush1.msra.mxu0 %v49
    %138 = vmatprep.subr.mxu0 %v52
    %139 = vmatpush1.msra.mxu0 %v51
    %140 = vmatprep.subr.mxu0 %v54
    %141 = vmatpush1.msra.mxu0 %v53
    %142 = vmatprep.subr.mxu0 %v56
    %143 = vmatpush1.msra.mxu0 %v55
    %144 = vmatprep.subr.mxu0 %v58
    %145 = vmatpush1.msra.mxu0 %v57
    %146 = vmatprep.subr.mxu0 %v60
    %147 = vmatpush1.msra.mxu0 %v59
    %148 = vmatprep.subr.mxu0 %v62
    %149 = vmatpush1.msra.mxu0 %v61
    %150 = vmatprep.subr.mxu0 %v64
    %151 = vmatpush1.msra.mxu0 %v63
    %152 = vmatprep.subr.mxu0 %v66
    %153 = vmatpush1.msra.mxu0 %v65
    %154 = vmatprep.subr.mxu0 %v68
    %155 = vmatpush1.msra.mxu0 %v67
    %156 = vmatprep.subr.mxu0 %v70
    %157 = vmatpush1.msra.mxu0 %v69
    %158 = vmatprep.subr.mxu0 %v72
    %159 = vmatpush1.msra.mxu0 %v71
    %160 = vmatprep.subr.mxu0 %v74
    %161 = vmatpush1.msra.mxu0 %v73
    %162 = vmatprep.subr.mxu0 %v76
    %163 = vmatpush1.msra.mxu0 %v75
    %164 = vmatprep.subr.mxu0 %v78
    %165 = vmatpush1.msra.mxu0 %v77
    %166 = vmatprep.subr.mxu0 %v80
    %167 = vmatpush1.msra.mxu0 %v79
    %168 = vmatprep.subr.mxu0 %v82
    %169 = vmatpush1.msra.mxu0 %v81
    %170 = vmatprep.subr.mxu0 %v84
    %171 = vmatpush1.msra.mxu0 %v83
    %172 = vmatprep.subr.mxu0 %v86
    %173 = vmatpush1.msra.mxu0 %v85
    %174 = vmatprep.subr.mxu0 %v88
    %175 = vmatpush1.msra.mxu0 %v87
    %176 = vmatprep.subr.mxu0 %v90
    %177 = vmatpush1.msra.mxu0 %v89
    %178 = vmatprep.subr.mxu0 %v92
    %179 = vmatpush1.msra.mxu0 %v91
    %180 = vmatprep.subr.mxu0 %v94
    %181 = vmatpush1.msra.mxu0 %v93
    %182 = vmatprep.subr.mxu0 %v96
    %183 = vmatpush1.msra.mxu0 %v95
    %184 = vmatprep.subr.mxu0 %v98
    %185 = vmatpush1.msra.mxu0 %v97
    %186 = vmatprep.subr.mxu0 %v100
    %187 = vmatpush1.msra.mxu0 %v99
    %188 = vmatprep.subr.mxu0 %v102
    %189 = vmatpush1.msra.mxu0 %v101
    %190 = vmatprep.subr.mxu0 %v104
    %191 = vmatpush1.msra.mxu0 %v103
    %192 = vmatprep.subr.mxu0 %v106
    %193 = vmatpush1.msra.mxu0 %v105
    %194 = vmatprep.subr.mxu0 %v108
    %195 = vmatpush1.msra.mxu0 %v107
    %196 = vmatprep.subr.mxu0 %v110
    %197 = vmatpush1.msra.mxu0 %v109
    %198 = vmatprep.subr.mxu0 %v112
    %199 = vmatpush1.msra.mxu0 %v111
    %200 = vmatprep.mubr.f32.mxu0 %v122
    %201 = vmatmul.mubr.f32.gmra.mrb[0].mxu0 %v118
    %v202 = vpop.f32.mrb[0].mxu0
    %v203 = vadd.f32 %v129, %v202
    %v204 = vpop.f32.mrb[0].mxu0
    %v205 = vadd.f32 %v133, %v204
    %206 = vdwg.mxu0
    %208 = vset.pattern.permute.xlu0 0
    %209 = vperm.xlu0 %208, %v46
    %v210 = vpop.permute.xlu0 %209
    %v213 = vlaneseq
    %v214 = vshrl.u32 %v213, 7
    %v215 = vsub.s32 0, %v214
    %v216 = vrot.slane %v47, %v215
    %v217 = vlaneseq
    %v218 = vshrl.u32 %v217, 7
    %v219 = vsub.s32 4, %v218
    %v220 = vrot.slane %v47, %v219
    %v223 = vlaneseq
    %v224 = vshrl.u32 %v223, 7
    %v225 = vsub.s32 0, %v224
    %v226 = vrot.slane %v216, %v225
    %v227 = vlaneseq
    %v228 = vshrl.u32 %v227, 7
    %v229 = vsub.s32 0, %v228
    %v230 = vrot.slane %v220, %v229
    %v231 = vmul.f32 %v210, %v226
    %v232 = vmul.f32 %v210, %v230
    %v233 = vlaneseq
    %v234 = vshrl.u32 %v233, 7
    %v235 = vsub.s32 0, %v234
    %v236 = vrot.slane %v203, %v235
    %v237 = vlaneseq
    %v238 = vshrl.u32 %v237, 7
    %v239 = vsub.s32 0, %v238
    %v240 = vrot.slane %v205, %v239
    %v241 = vadd.f32 %v236, %v231
    %v242 = vadd.f32 %v240, %v232
    %243 = vset.pattern.permute.xlu0 1
    %244 = vperm.xlu0 %243, %v46
    %v245 = vpop.permute.xlu0 %244
    %v247 = vlaneseq
    %v248 = vshrl.u32 %v247, 7
    %v249 = vsub.s32 1, %v248
    %v250 = vrot.slane %v47, %v249
    %v251 = vlaneseq
    %v252 = vshrl.u32 %v251, 7
    %v253 = vsub.s32 5, %v252
    %v254 = vrot.slane %v47, %v253
    %v257 = vlaneseq
    %v258 = vshrl.u32 %v257, 7
    %v259 = vsub.s32 1, %v258
    %v260 = vrot.slane %v250, %v259
    %v261 = vlaneseq
    %v262 = vshrl.u32 %v261, 7
    %v263 = vsub.s32 1, %v262
    %v264 = vrot.slane %v254, %v263
    %v265 = vmul.f32 %v245, %v260
    %v266 = vmul.f32 %v245, %v264
    %v267 = vadd.f32 %v241, %v265
    %v268 = vadd.f32 %v242, %v266
    %269 = vset.pattern.permute.xlu0 2
    %270 = vperm.xlu0 %269, %v46
    %v271 = vpop.permute.xlu0 %270
    %v273 = vlaneseq
    %v274 = vshrl.u32 %v273, 7
    %v275 = vsub.s32 2, %v274
    %v276 = vrot.slane %v47, %v275
    %v277 = vlaneseq
    %v278 = vshrl.u32 %v277, 7
    %v279 = vsub.s32 6, %v278
    %v280 = vrot.slane %v47, %v279
    %v283 = vlaneseq
    %v284 = vshrl.u32 %v283, 7
    %v285 = vsub.s32 2, %v284
    %v286 = vrot.slane %v276, %v285
    %v287 = vlaneseq
    %v288 = vshrl.u32 %v287, 7
    %v289 = vsub.s32 2, %v288
    %v290 = vrot.slane %v280, %v289
    %v291 = vmul.f32 %v271, %v286
    %v292 = vmul.f32 %v271, %v290
    %v293 = vadd.f32 %v267, %v291
    %v294 = vadd.f32 %v268, %v292
    %vm295 = vcmp.gt.f32.partialorder %v293, 0.0
    %vm296 = vcmp.gt.f32.partialorder %v294, 0.0
    %v297 = vmul.f32 %v293, 0.1
    %v298 = vmul.f32 %v294, 0.1
    %v299 = vsel %vm295, %v293, %v297
    %v300 = vsel %vm296, %v294, %v298
    %v301 = vpack.c.bf16 %v299, %v299
    %v302 = vpack.c.bf16 %v300, %v300
    %v303 = vld [vmem:[%s5] sm:$0xff]
    %v304 = vld [vmem:[%s5 + $0x8] sm:$0xff]
    %v305 = vld [vmem:[%s5 + $0x10] sm:$0xff]
    %v306 = vld [vmem:[%s5 + $0x18] sm:$0xff]
    %v307 = vld [vmem:[%s5 + $0x20] sm:$0xff]
    %v308 = vld [vmem:[%s5 + $0x28] sm:$0xff]
    %v309 = vld [vmem:[%s5 + $0x30] sm:$0xff]
    %v310 = vld [vmem:[%s5 + $0x38] sm:$0xff]
    %v311 = vld [vmem:[%s5 + $0x40] sm:$0xff]
    %v312 = vld [vmem:[%s5 + $0x48] sm:$0xff]
    %v313 = vld [vmem:[%s5 + $0x50] sm:$0xff]
    %v314 = vld [vmem:[%s5 + $0x58] sm:$0xff]
    %v315 = vld [vmem:[%s5 + $0x60] sm:$0xff]
    %v316 = vld [vmem:[%s5 + $0x68] sm:$0xff]
    %v317 = vld [vmem:[%s5 + $0x70] sm:$0xff]
    %v318 = vld [vmem:[%s5 + $0x78] sm:$0xff]
    %v319 = vld [vmem:[%s5 + $0x80] sm:$0xff]
    %v320 = vld [vmem:[%s5 + $0x88] sm:$0xff]
    %v321 = vld [vmem:[%s5 + $0x90] sm:$0xff]
    %v322 = vld [vmem:[%s5 + $0x98] sm:$0xff]
    %v323 = vld [vmem:[%s5 + $0xa0] sm:$0xff]
    %v324 = vld [vmem:[%s5 + $0xa8] sm:$0xff]
    %v325 = vld [vmem:[%s5 + $0xb0] sm:$0xff]
    %v326 = vld [vmem:[%s5 + $0xb8] sm:$0xff]
    %v327 = vld [vmem:[%s5 + $0xc0] sm:$0xff]
    %v328 = vld [vmem:[%s5 + $0xc8] sm:$0xff]
    %v329 = vld [vmem:[%s5 + $0xd0] sm:$0xff]
    %v330 = vld [vmem:[%s5 + $0xd8] sm:$0xff]
    %v331 = vld [vmem:[%s5 + $0xe0] sm:$0xff]
    %v332 = vld [vmem:[%s5 + $0xe8] sm:$0xff]
    %v333 = vld [vmem:[%s5 + $0xf0] sm:$0xff]
    %v334 = vld [vmem:[%s5 + $0xf8] sm:$0xff]
    %v335 = vld [vmem:[%s6] sm:$0x3]
    %v337 = vlaneseq
    %v338 = vshrl.u32 %v337, 7
    %v339 = vsub.s32 0, %v338
    %v340 = vrot.slane %v335, %v339
    %v341 = vlaneseq
    %v342 = vshrl.u32 %v341, 7
    %v343 = vsub.s32 1, %v342
    %v344 = vrot.slane %v335, %v343
    %v379 = vunpack.c.l.b16 %v303
    %v380 = vunpack.c.h.b16 %v303
    %v381 = vunpack.c.l.b16 %v304
    %v382 = vunpack.c.h.b16 %v304
    %v383 = vunpack.c.l.b16 %v305
    %v384 = vunpack.c.h.b16 %v305
    %v385 = vunpack.c.l.b16 %v306
    %v386 = vunpack.c.h.b16 %v306
    %v387 = vunpack.c.l.b16 %v307
    %v388 = vunpack.c.h.b16 %v307
    %v389 = vunpack.c.l.b16 %v308
    %v390 = vunpack.c.h.b16 %v308
    %v391 = vunpack.c.l.b16 %v309
    %v392 = vunpack.c.h.b16 %v309
    %v393 = vunpack.c.l.b16 %v310
    %v394 = vunpack.c.h.b16 %v310
    %v395 = vunpack.c.l.b16 %v311
    %v396 = vunpack.c.h.b16 %v311
    %v397 = vunpack.c.l.b16 %v312
    %v398 = vunpack.c.h.b16 %v312
    %v399 = vunpack.c.l.b16 %v313
    %v400 = vunpack.c.h.b16 %v313
    %v401 = vunpack.c.l.b16 %v314
    %v402 = vunpack.c.h.b16 %v314
    %v403 = vunpack.c.l.b16 %v315
    %v404 = vunpack.c.h.b16 %v315
    %v405 = vunpack.c.l.b16 %v316
    %v406 = vunpack.c.h.b16 %v316
    %v407 = vunpack.c.l.b16 %v317
    %v408 = vunpack.c.h.b16 %v317
    %v409 = vunpack.c.l.b16 %v318
    %v410 = vunpack.c.h.b16 %v318
    %v411 = vunpack.c.l.b16 %v319
    %v412 = vunpack.c.h.b16 %v319
    %v413 = vunpack.c.l.b16 %v320
    %v414 = vunpack.c.h.b16 %v320
    %v415 = vunpack.c.l.b16 %v321
    %v416 = vunpack.c.h.b16 %v321
    %v417 = vunpack.c.l.b16 %v322
    %v418 = vunpack.c.h.b16 %v322
    %v419 = vunpack.c.l.b16 %v323
    %v420 = vunpack.c.h.b16 %v323
    %v421 = vunpack.c.l.b16 %v324
    %v422 = vunpack.c.h.b16 %v324
    %v423 = vunpack.c.l.b16 %v325
    %v424 = vunpack.c.h.b16 %v325
    %v425 = vunpack.c.l.b16 %v326
    %v426 = vunpack.c.h.b16 %v326
    %v427 = vunpack.c.l.b16 %v327
    %v428 = vunpack.c.h.b16 %v327
    %v429 = vunpack.c.l.b16 %v328
    %v430 = vunpack.c.h.b16 %v328
    %v431 = vunpack.c.l.b16 %v329
    %v432 = vunpack.c.h.b16 %v329
    %v433 = vunpack.c.l.b16 %v330
    %v434 = vunpack.c.h.b16 %v330
    %v435 = vunpack.c.l.b16 %v331
    %v436 = vunpack.c.h.b16 %v331
    %v437 = vunpack.c.l.b16 %v332
    %v438 = vunpack.c.h.b16 %v332
    %v439 = vunpack.c.l.b16 %v333
    %v440 = vunpack.c.h.b16 %v333
    %v441 = vunpack.c.l.b16 %v334
    %v442 = vunpack.c.h.b16 %v334
    %v443 = vpack.c.b16 %v381, %v379
    %v444 = vpack.c.b16 %v382, %v380
    %v445 = vpack.c.b16 %v385, %v383
    %v446 = vpack.c.b16 %v386, %v384
    %v447 = vpack.c.b16 %v389, %v387
    %v448 = vpack.c.b16 %v390, %v388
    %v449 = vpack.c.b16 %v393, %v391
    %v450 = vpack.c.b16 %v394, %v392
    %v451 = vpack.c.b16 %v397, %v395
    %v452 = vpack.c.b16 %v398, %v396
    %v453 = vpack.c.b16 %v401, %v399
    %v454 = vpack.c.b16 %v402, %v400
    %v455 = vpack.c.b16 %v405, %v403
    %v456 = vpack.c.b16 %v406, %v404
    %v457 = vpack.c.b16 %v409, %v407
    %v458 = vpack.c.b16 %v410, %v408
    %v459 = vpack.c.b16 %v413, %v411
    %v460 = vpack.c.b16 %v414, %v412
    %v461 = vpack.c.b16 %v417, %v415
    %v462 = vpack.c.b16 %v418, %v416
    %v463 = vpack.c.b16 %v421, %v419
    %v464 = vpack.c.b16 %v422, %v420
    %v465 = vpack.c.b16 %v425, %v423
    %v466 = vpack.c.b16 %v426, %v424
    %v467 = vpack.c.b16 %v429, %v427
    %v468 = vpack.c.b16 %v430, %v428
    %v469 = vpack.c.b16 %v433, %v431
    %v470 = vpack.c.b16 %v434, %v432
    %v471 = vpack.c.b16 %v437, %v435
    %v472 = vpack.c.b16 %v438, %v436
    %v473 = vpack.c.b16 %v441, %v439
    %v474 = vpack.c.b16 %v442, %v440
    %507 = vmatprep.subr.bf16.mxu0 %v444
    %508 = vmatpush1.bf16.msra.mxu0 %v443
    %509 = vmatprep.subr.bf16.mxu0 %v446
    %510 = vmatpush1.bf16.msra.mxu0 %v445
    %511 = vmatprep.subr.bf16.mxu0 %v448
    %512 = vmatpush1.bf16.msra.mxu0 %v447
    %513 = vmatprep.subr.bf16.mxu0 %v450
    %514 = vmatpush1.bf16.msra.mxu0 %v449
    %515 = vmatprep.subr.bf16.mxu0 %v452
    %516 = vmatpush1.bf16.msra.mxu0 %v451
    %517 = vmatprep.subr.bf16.mxu0 %v454
    %518 = vmatpush1.bf16.msra.mxu0 %v453
    %519 = vmatprep.subr.bf16.mxu0 %v456
    %520 = vmatpush1.bf16.msra.mxu0 %v455
    %521 = vmatprep.subr.bf16.mxu0 %v458
    %522 = vmatpush1.bf16.msra.mxu0 %v457
    %523 = vmatprep.subr.bf16.mxu0 %v460
    %524 = vmatpush1.bf16.msra.mxu0 %v459
    %525 = vmatprep.subr.bf16.mxu0 %v462
    %526 = vmatpush1.bf16.msra.mxu0 %v461
    %527 = vmatprep.subr.bf16.mxu0 %v464
    %528 = vmatpush1.bf16.msra.mxu0 %v463
    %529 = vmatprep.subr.bf16.mxu0 %v466
    %530 = vmatpush1.bf16.msra.mxu0 %v465
    %531 = vmatprep.subr.bf16.mxu0 %v468
    %532 = vmatpush1.bf16.msra.mxu0 %v467
    %533 = vmatprep.subr.bf16.mxu0 %v470
    %534 = vmatpush1.bf16.msra.mxu0 %v469
    %535 = vmatprep.subr.bf16.mxu0 %v472
    %536 = vmatpush1.bf16.msra.mxu0 %v471
    %537 = vmatprep.subr.bf16.mxu0 %v474
    %538 = vmatpush1.bf16.msra.mxu0 %v473
    %539 = vmatprep.mubr.bf16.mxu0 %v302
    %540 = vmatmul.mubr.bf16.gmra.mrb[0].mxu0 %v301
    %v541 = vpop.f32.mrb[0].mxu0
    %v542 = vadd.f32 %v340, %v541
    %v543 = vpop.f32.mrb[0].mxu0
    %v544 = vadd.f32 %v344, %v543
    %v545 = vpop.f32.mrb[0].mxu0
    %v546 = vpop.f32.mrb[0].mxu0
    %547 = vdwg.mxu0
    %vm548 = vcmp.gt.f32.partialorder %v542, 0.0
    %vm549 = vcmp.gt.f32.partialorder %v544, 0.0
    %v550 = vmul.f32 %v542, 0.1
    %v551 = vmul.f32 %v544, 0.1
    %v552 = vsel %vm548, %v542, %v550
    %v553 = vsel %vm549, %v544, %v551
    %v554 = vld [vmem:[%s7] sm:$0xff]
    %v555 = vld [vmem:[%s7 + $0x8] sm:$0xff]
    %v556 = vld [vmem:[%s7 + $0x10] sm:$0xff]
    %v557 = vld [vmem:[%s7 + $0x18] sm:$0xff]
    %v558 = vld [vmem:[%s7 + $0x20] sm:$0xff]
    %v559 = vld [vmem:[%s7 + $0x28] sm:$0xff]
    %v560 = vld [vmem:[%s7 + $0x30] sm:$0xff]
    %v561 = vld [vmem:[%s7 + $0x38] sm:$0xff]
    %v562 = vld [vmem:[%s7 + $0x40] sm:$0xff]
    %v563 = vld [vmem:[%s7 + $0x48] sm:$0xff]
    %v564 = vld [vmem:[%s7 + $0x50] sm:$0xff]
    %v565 = vld [vmem:[%s7 + $0x58] sm:$0xff]
    %v566 = vld [vmem:[%s7 + $0x60] sm:$0xff]
    %v567 = vld [vmem:[%s7 + $0x68] sm:$0xff]
    %v568 = vld [vmem:[%s7 + $0x70] sm:$0xff]
    %v569 = vld [vmem:[%s7 + $0x78] sm:$0xff]
    %v570 = vld [vmem:[%s7 + $0x80] sm:$0xff]
    %v571 = vld [vmem:[%s7 + $0x88] sm:$0xff]
    %v572 = vld [vmem:[%s7 + $0x90] sm:$0xff]
    %v573 = vld [vmem:[%s7 + $0x98] sm:$0xff]
    %v574 = vld [vmem:[%s7 + $0xa0] sm:$0xff]
    %v575 = vld [vmem:[%s7 + $0xa8] sm:$0xff]
    %v576 = vld [vmem:[%s7 + $0xb0] sm:$0xff]
    %v577 = vld [vmem:[%s7 + $0xb8] sm:$0xff]
    %v578 = vld [vmem:[%s7 + $0xc0] sm:$0xff]
    %v579 = vld [vmem:[%s7 + $0xc8] sm:$0xff]
    %v580 = vld [vmem:[%s7 + $0xd0] sm:$0xff]
    %v581 = vld [vmem:[%s7 + $0xd8] sm:$0xff]
    %v582 = vld [vmem:[%s7 + $0xe0] sm:$0xff]
    %v583 = vld [vmem:[%s7 + $0xe8] sm:$0xff]
    %v584 = vld [vmem:[%s7 + $0xf0] sm:$0xff]
    %v585 = vld [vmem:[%s7 + $0xf8] sm:$0xff]
    %v586 = vld [vmem:[%s8] sm:$0x1]
    %v588 = vlaneseq
    %v589 = vshrl.u32 %v588, 7
    %v590 = vsub.s32 0, %v589
    %v591 = vrot.slane %v586, %v590
    %593 = vmatprep.subr.mxu0 0.0
    %594 = vmatpush1.msra.mxu0 %v554
    %595 = vmatprep.subr.mxu0 0.0
    %596 = vmatpush1.msra.mxu0 %v555
    %597 = vmatprep.subr.mxu0 0.0
    %598 = vmatpush1.msra.mxu0 %v556
    %599 = vmatprep.subr.mxu0 0.0
    %600 = vmatpush1.msra.mxu0 %v557
    %601 = vmatprep.subr.mxu0 0.0
    %602 = vmatpush1.msra.mxu0 %v558
    %603 = vmatprep.subr.mxu0 0.0
    %604 = vmatpush1.msra.mxu0 %v559
    %605 = vmatprep.subr.mxu0 0.0
    %606 = vmatpush1.msra.mxu0 %v560
    %607 = vmatprep.subr.mxu0 0.0
    %608 = vmatpush1.msra.mxu0 %v561
    %609 = vmatprep.subr.mxu0 0.0
    %610 = vmatpush1.msra.mxu0 %v562
    %611 = vmatprep.subr.mxu0 0.0
    %612 = vmatpush1.msra.mxu0 %v563
    %613 = vmatprep.subr.mxu0 0.0
    %614 = vmatpush1.msra.mxu0 %v564
    %615 = vmatprep.subr.mxu0 0.0
    %616 = vmatpush1.msra.mxu0 %v565
    %617 = vmatprep.subr.mxu0 0.0
    %618 = vmatpush1.msra.mxu0 %v566
    %619 = vmatprep.subr.mxu0 0.0
    %620 = vmatpush1.msra.mxu0 %v567
    %621 = vmatprep.subr.mxu0 0.0
    %622 = vmatpush1.msra.mxu0 %v568
    %623 = vmatprep.subr.mxu0 0.0
    %624 = vmatpush1.msra.mxu0 %v569
    %625 = vmatprep.subr.mxu0 0.0
    %626 = vmatpush1.msra.mxu0 %v570
    %627 = vmatprep.subr.mxu0 0.0
    %628 = vmatpush1.msra.mxu0 %v571
    %629 = vmatprep.subr.mxu0 0.0
    %630 = vmatpush1.msra.mxu0 %v572
    %631 = vmatprep.subr.mxu0 0.0
    %632 = vmatpush1.msra.mxu0 %v573
    %633 = vmatprep.subr.mxu0 0.0
    %634 = vmatpush1.msra.mxu0 %v574
    %635 = vmatprep.subr.mxu0 0.0
    %636 = vmatpush1.msra.mxu0 %v575
    %637 = vmatprep.subr.mxu0 0.0
    %638 = vmatpush1.msra.mxu0 %v576
    %639 = vmatprep.subr.mxu0 0.0
    %640 = vmatpush1.msra.mxu0 %v577
    %641 = vmatprep.subr.mxu0 0.0
    %642 = vmatpush1.msra.mxu0 %v578
    %643 = vmatprep.subr.mxu0 0.0
    %644 = vmatpush1.msra.mxu0 %v579
    %645 = vmatprep.subr.mxu0 0.0
    %646 = vmatpush1.msra.mxu0 %v580
    %647 = vmatprep.subr.mxu0 0.0
    %648 = vmatpush1.msra.mxu0 %v581
    %649 = vmatprep.subr.mxu0 0.0
    %650 = vmatpush1.msra.mxu0 %v582
    %651 = vmatprep.subr.mxu0 0.0
    %652 = vmatpush1.msra.mxu0 %v583
    %653 = vmatprep.subr.mxu0 0.0
    %654 = vmatpush1.msra.mxu0 %v584
    %655 = vmatprep.subr.mxu0 0.0
    %656 = vmatpush1.msra.mxu0 %v585
    %657 = vmatprep.mubr.f32.mxu0 %v553
    %658 = vmatmul.mubr.f32.gmra.mrb[0].mxu0 %v552
    %v659 = vpop.f32.mrb[0].mxu0
    %v660 = vadd.f32 %v591, %v659
    %v661 = vpop.f32.mrb[0].mxu0
    %662 = vdwg.mxu0
    %vm663 = vcmp.gt.f32.partialorder %v660, 0.0
    %v664 = vmul.f32 %v660, 0.1
    %v665 = vsel %vm663, %v660, %v664
    %vm666 = vcmask 31744
    %667 = vst.msk [vmem:[%s9] sm:$0xff] %vm666, %v665
    // Predicated region
    $region42: #{tpu_custom_call.1} parent=1 // pred_check
      _
    $region43: #{tpu_custom_call.1} parent=1 // pred_check_branch
      %669 = sbr.rel (0) target = $region45
    $region44: #{tpu_custom_call.1} parent=1 // pred_region
      _
    $region45: #{tpu_custom_call.1} parent=1 // pred_fallthru
      _
    // Predicated region
    $region46: #{tpu_custom_call.1} parent=1 // pred_check
      _
    $region47: #{tpu_custom_call.1} parent=1 // pred_check_branch
      %671 = sbr.rel (0) target = $region49
    $region48: #{tpu_custom_call.1} parent=1 // pred_region
      _
    $region49: #{tpu_custom_call.1} parent=1 // pred_fallthru
      _
    %672 = vsyncpa [#allocation3], 1

</llo_original>
